<compile_context>
chip_gen: v7x
topology: tpu7x:2x2x1
jax: 0.10.0
libtpu: 0.0.40
codegen_flags: <defaults>
</compile_context>

<pallas_src>
import functools

import numpy as np
import jax
import jax.numpy as jnp
from jax.experimental import pallas as pl
from jax.experimental.pallas import tpu as pltpu

LANE = 128

# yw1_z/yw1_a and iw1_z/iw1_zn are adjacent so the fused K=256 matmuls can slice a
# contiguous 256-row block out of w_pack.
WEIGHT_ORDER = ("ew1", "ew2", "dw1", "dw2",
                "yw1_z", "yw1_a", "yw2",
                "iw1_z", "iw1_zn", "iw2", "iw3")
BIAS_ORDER = ("eb1", "eb2", "db1", "db2", "yb1", "yb2", "ib1", "ib2", "ib3")
WIDX = {n: i for i, n in enumerate(WEIGHT_ORDER)}
BIDX = {n: i for i, n in enumerate(BIAS_ORDER)}


# ---------------------------------------------------------------------------
# Pallas kernel: entire UPN forward pass
# ---------------------------------------------------------------------------
def upn_kernel(x_ref, w_ref, b_ref, out_ref):
    f32 = jnp.float32
    bf16 = jnp.bfloat16
    B = out_ref.shape[0]                     # padded batch (multiple of 8)

    def w(name, rows=LANE):                  # tile-aligned static slice of w_pack
        r = WIDX[name] * LANE
        return w_ref[r:r + rows, :]

    def bias(name):                          # [1,128] f32, 8-row-aligned static slice
        r = BIDX[name] * 8
        return b_ref[r:r + 1, :]

    def dot(x16, name, rows=LANE):           # bf16 MXU matmul, f32 accumulate
        return jnp.dot(x16, w(name, rows), preferred_element_type=f32)

    x16 = x_ref[...].astype(bf16)            # [3B,128]: (state ; next_state ; action)
    x2_16 = x16[:2 * B]                      # states stacked along batch
    act16 = x16[2 * B:]                      # action, lane-padded with zeros

    # --- encoder (shared weights) on both states at once ---
    h = jnp.maximum(dot(x2_16, "ew1") + bias("eb1"), 0.0)
    zz = dot(h.astype(bf16), "ew2") + bias("eb2")        # [2B,128]; lanes >= L are 0
    z, z_next = zz[:B], zz[B:]                           # f32 slices, sublane-aligned
    z16 = z.astype(bf16)                                 # cast reused activations once
    z_next16 = z_next.astype(bf16)

    # --- dynamics: one fused K=256 matmul over (yw1_z ; yw1_a) ---
    za16 = jnp.concatenate([z16, act16], axis=-1)        # [B,256] (lane concat)
    h = jnp.maximum(dot(za16, "yw1_z", 2 * LANE) + bias("yb1"), 0.0)
    z_pred = dot(h.astype(bf16), "yw2") + bias("yb2")

    # --- inverse dynamics: one fused K=256 matmul over (iw1_z ; iw1_zn) ---
    zzn16 = jnp.concatenate([z16, z_next16], axis=-1)    # [B,256]
    h = jnp.maximum(dot(zzn16, "iw1_z", 2 * LANE) + bias("ib1"), 0.0)
    h = jnp.maximum(dot(h.astype(bf16), "iw2") + bias("ib2"), 0.0)
    action_pred = dot(h.astype(bf16), "iw3") + bias("ib3")

    # --- decoder (shared weights) on (z ; z_pred ; z_next) at once ---
    # sublane concat done in f32 to stay on (8,128) tiles, then a single cast
    zs16 = jnp.concatenate([z, z_pred, z_next], axis=0).astype(bf16)   # [3B,128]
    h = jnp.maximum(dot(zs16, "dw1") + bias("db1"), 0.0)
    dec = dot(h.astype(bf16), "dw2") + bias("db2")                     # [3B,128]

    # --- 7 direct lane-aligned slice stores (no 896-wide intermediate) ---
    out_ref[:, 0 * LANE:1 * LANE] = z
    out_ref[:, 1 * LANE:2 * LANE] = z_next
    out_ref[:, 2 * LANE:3 * LANE] = z_pred
    out_ref[:, 3 * LANE:4 * LANE] = action_pred
    out_ref[:, 4 * LANE:5 * LANE] = dec[:B]              # state_recon
    out_ref[:, 5 * LANE:6 * LANE] = dec[2 * B:]          # next_state_recon
    out_ref[:, 6 * LANE:7 * LANE] = dec[B:2 * B]         # next_state_pred


# ---------------------------------------------------------------------------
# Wrapper
# ---------------------------------------------------------------------------
@functools.partial(jax.jit, static_argnames=("latent_dim",))
def upn_forward(state, action, next_state, w_pack, b_pack, latent_dim):
    B, S = state.shape
    A = action.shape[1]
    L = latent_dim
    Bp = ((B + 7) // 8) * 8                  # pad batch to the f32 sublane tile

    def prep(x):                             # zero-pad to [Bp, 128]
        return jnp.pad(x, ((0, Bp - x.shape[0]), (0, LANE - x.shape[1])))

    x_all = jnp.concatenate([prep(state), prep(next_state), prep(action)], axis=0)

    # advisory cost: 17 "128x128-block" matmul equivalents per batch row
    flops = 2 * LANE * LANE * 17 * Bp
    bytes_accessed = (w_pack.size * 2 + b_pack.size * 4
                      + x_all.size * 4 + Bp * 7 * LANE * 4)

    vmem = pl.BlockSpec(memory_space=pltpu.MemorySpace.VMEM)
    out = pl.pallas_call(
        upn_kernel,
        out_shape=jax.ShapeDtypeStruct((Bp, 7 * LANE), jnp.float32),
        in_specs=[vmem] * 3,
        out_specs=vmem,
        cost_estimate=pl.CostEstimate(flops=flops, transcendentals=0,
                                      bytes_accessed=bytes_accessed),
    )(x_all, w_pack, b_pack)

    z = out[:B, 0 * LANE:0 * LANE + L]
    z_next = out[:B, 1 * LANE:1 * LANE + L]
    z_pred = out[:B, 2 * LANE:2 * LANE + L]
    action_pred = out[:B, 3 * LANE:3 * LANE + A]
    state_recon = out[:B, 4 * LANE:4 * LANE + S]
    next_state_recon = out[:B, 5 * LANE:5 * LANE + S]
    next_state_pred = out[:B, 6 * LANE:6 * LANE + S]
    return (z, z_next, z_pred, action_pred,
            state_recon, next_state_recon, next_state_pred)


# ---------------------------------------------------------------------------
# Host-side parameter packing (done once, outside the hot path)
# ---------------------------------------------------------------------------
def prepare_params(params):
    """Split concat weights at aligned boundaries and pack into 2 flat buffers."""
    L = params["ew2"].shape[1]
    raw = {k: np.asarray(v, np.float32) for k, v in params.items()}
    raw["yw1_z"], raw["yw1_a"] = raw["yw1"][:L], raw["yw1"][L:]
    raw["iw1_z"], raw["iw1_zn"] = raw["iw1"][:L], raw["iw1"][L:]

    w_pack = np.zeros((len(WEIGHT_ORDER) * LANE, LANE), np.float32)
    for name in WEIGHT_ORDER:
        wm = raw[name]
        assert wm.shape[0] <= LANE and wm.shape[1] <= LANE
        r = WIDX[name] * LANE
        w_pack[r:r + wm.shape[0], :wm.shape[1]] = wm

    b_pack = np.zeros((len(BIAS_ORDER) * 8, LANE), np.float32)
    for name in BIAS_ORDER:
        bv = raw[name].reshape(-1)
        assert bv.shape[0] <= LANE
        b_pack[BIDX[name] * 8, :bv.shape[0]] = bv

    return jnp.asarray(w_pack, jnp.bfloat16), jnp.asarray(b_pack, jnp.float32)


# ---------------------------------------------------------------------------
# Deterministic parameter init (synthetic; shapes follow UPN.__init__)
# ---------------------------------------------------------------------------
def init_params(key, state_dim, action_dim, latent_dim, hidden):
    def linear(key, fan_in, fan_out):
        kw, kb = jax.random.split(key)
        bound = 1.0 / jnp.sqrt(fan_in)
        w = jax.random.uniform(kw, (fan_in, fan_out), jnp.float32, -bound, bound)
        b = jax.random.uniform(kb, (1, fan_out), jnp.float32, -bound, bound)
        return w, b

    keys = jax.random.split(key, 9)
    p = {}
    p["ew1"], p["eb1"] = linear(keys[0], state_dim, hidden)
    p["ew2"], p["eb2"] = linear(keys[1], hidden, latent_dim)
    p["dw1"], p["db1"] = linear(keys[2], latent_dim, hidden)
    p["dw2"], p["db2"] = linear(keys[3], hidden, state_dim)
    p["yw1"], p["yb1"] = linear(keys[4], latent_dim + action_dim, hidden)
    p["yw2"], p["yb2"] = linear(keys[5], hidden, latent_dim)
    p["iw1"], p["ib1"] = linear(keys[6], 2 * latent_dim, hidden)
    p["iw2"], p["ib2"] = linear(keys[7], hidden, hidden)
    p["iw3"], p["ib3"] = linear(keys[8], hidden, action_dim)
    return p


# ---------------------------------------------------------------------------
# Pure-JAX references for verification
# ---------------------------------------------------------------------------
def upn_reference(state, action, next_state, p, cast=lambda x: x):
    f32 = jnp.float32

    def lin(x, w, b):
        return jnp.dot(cast(x), cast(w), preferred_element_type=f32) + b

    def mlp2(x, w1, b1, w2, b2):
        return lin(jnp.maximum(lin(x, w1, b1), 0.0), w2, b2)

    z = mlp2(state, p["ew1"], p["eb1"], p["ew2"], p["eb2"])
    z_next = mlp2(next_state, p["ew1"], p["eb1"], p["ew2"], p["eb2"])
    z_pred = mlp2(jnp.concatenate([z, action], -1),
                  p["yw1"], p["yb1"], p["yw2"], p["yb2"])
    h = jnp.maximum(lin(jnp.concatenate([z, z_next], -1), p["iw1"], p["ib1"]), 0.0)
    h = jnp.maximum(lin(h, p["iw2"], p["ib2"]), 0.0)
    action_pred = lin(h, p["iw3"], p["ib3"])
    state_recon = mlp2(z, p["dw1"], p["db1"], p["dw2"], p["db2"])
    next_state_pred = mlp2(z_pred, p["dw1"], p["db1"], p["dw2"], p["db2"])
    next_state_recon = mlp2(z_next, p["dw1"], p["db1"], p["dw2"], p["db2"])
    return (z, z_next, z_pred, action_pred,
            state_recon, next_state_recon, next_state_pred)


if __name__ == "__main__":
    # HalfCheetah-v4-like dims with args.latent_size=100, args.upn_hidden_layer=64
    B, STATE_DIM, ACTION_DIM, LATENT_DIM, HIDDEN = 8, 17, 6, 100, 64

    key = jax.random.PRNGKey(0)
    k_params, k_s, k_a, k_ns = jax.random.split(key, 4)

    params = init_params(k_params, STATE_DIM, ACTION_DIM, LATENT_DIM, HIDDEN)
    w_pack, b_pack = prepare_params(params)

    state = jax.random.normal(k_s, (B, STATE_DIM), jnp.float32)
    action = jax.random.normal(k_a, (B, ACTION_DIM), jnp.float32)
    next_state = jax.random.normal(k_ns, (B, STATE_DIM), jnp.float32)

    outs = upn_forward(state, action, next_state, w_pack, b_pack, LATENT_DIM)
    outs = jax.block_until_ready(outs)

    ref_f32 = upn_reference(state, action, next_state, params)
    ref_bf16 = upn_reference(state, action, next_state, params,
                             cast=lambda x: x.astype(jnp.bfloat16))

    for o, rb, rf in zip(outs, ref_bf16, ref_f32):
        assert o.shape == rf.shape and o.dtype == jnp.float32
        # check vs a reference mimicking the kernel's bf16-matmul / f32-accum numerics
        assert jnp.allclose(o, rb, atol=5e-3, rtol=5e-3), "mismatch vs bf16 reference"
        # loose check vs the exact f32 (PyTorch-equivalent) reference
        assert jnp.allclose(o, rf, atol=5e-2, rtol=5e-2), "mismatch vs f32 reference"

    print("KERNEL_OK")
</pallas_src>

<mosaic_0001>
module attributes {stable_mosaic.version = 11 : i64} {
  func.func @upn_kernel(%arg0: memref<24x128xf32, #tpu.memory_space<vmem>>, %arg1: memref<1408x128xbf16, #tpu.memory_space<vmem>>, %arg2: memref<72x128xf32, #tpu.memory_space<vmem>>, %arg3: memref<8x896xf32, #tpu.memory_space<vmem>>) attributes {dimension_semantics = [], scalar_prefetch = 0 : i64, scratch_operands = 0 : i64, tpu.core_type = #tpu.core_type<tc>} {
    %c0 = arith.constant 0 : index
    %c0_0 = arith.constant 0 : index
    %0 = vector.load %arg0[%c0, %c0_0] : memref<24x128xf32, #tpu.memory_space<vmem>>, vector<24x128xf32>
    %1 = arith.truncf %0 : vector<24x128xf32> to vector<24x128xbf16>
    %2 = vector.extract_strided_slice %1 {offsets = [0, 0], sizes = [16, 128], strides = [1, 1]} : vector<24x128xbf16> to vector<16x128xbf16>
    %3 = vector.extract_strided_slice %1 {offsets = [16, 0], sizes = [8, 128], strides = [1, 1]} : vector<24x128xbf16> to vector<8x128xbf16>
    %c0_1 = arith.constant 0 : index
    %c0_2 = arith.constant 0 : index
    %4 = vector.load %arg1[%c0_1, %c0_2] : memref<1408x128xbf16, #tpu.memory_space<vmem>>, vector<128x128xbf16>
    %cst = arith.constant dense<0.000000e+00> : vector<16x128xf32>
    %5 = tpu.matmul %2, %4, %cst {dimension_numbers = #tpu.dot_dimension_numbers<[1], [0], [0], [1], [0, 0, 1, 1], [], []>} : vector<16x128xbf16>, vector<128x128xbf16>, vector<16x128xf32> -> vector<16x128xf32>
    %c0_3 = arith.constant 0 : index
    %c0_4 = arith.constant 0 : index
    %6 = vector.load %arg2[%c0_3, %c0_4] : memref<72x128xf32, #tpu.memory_space<vmem>>, vector<1x128xf32>
    %7 = vector.broadcast %6 : vector<1x128xf32> to vector<16x128xf32>
    %8 = arith.addf %5, %7 : vector<16x128xf32>
    %cst_5 = arith.constant 0.000000e+00 : f32
    %9 = vector.broadcast %cst_5 : f32 to vector<16x128xf32>
    %10 = arith.maximumf %8, %9 : vector<16x128xf32>
    %11 = arith.truncf %10 : vector<16x128xf32> to vector<16x128xbf16>
    %c128 = arith.constant 128 : index
    %c0_6 = arith.constant 0 : index
    %12 = vector.load %arg1[%c128, %c0_6] : memref<1408x128xbf16, #tpu.memory_space<vmem>>, vector<128x128xbf16>
    %cst_7 = arith.constant dense<0.000000e+00> : vector<16x128xf32>
    %13 = tpu.matmul %11, %12, %cst_7 {dimension_numbers = #tpu.dot_dimension_numbers<[1], [0], [0], [1], [0, 0, 1, 1], [], []>} : vector<16x128xbf16>, vector<128x128xbf16>, vector<16x128xf32> -> vector<16x128xf32>
    %c8 = arith.constant 8 : index
    %c0_8 = arith.constant 0 : index
    %14 = vector.load %arg2[%c8, %c0_8] : memref<72x128xf32, #tpu.memory_space<vmem>>, vector<1x128xf32>
    %15 = vector.broadcast %14 : vector<1x128xf32> to vector<16x128xf32>
    %16 = arith.addf %13, %15 : vector<16x128xf32>
    %17 = vector.extract_strided_slice %16 {offsets = [0, 0], sizes = [8, 128], strides = [1, 1]} : vector<16x128xf32> to vector<8x128xf32>
    %18 = vector.extract_strided_slice %16 {offsets = [8, 0], sizes = [8, 128], strides = [1, 1]} : vector<16x128xf32> to vector<8x128xf32>
    %19 = arith.truncf %17 : vector<8x128xf32> to vector<8x128xbf16>
    %20 = arith.truncf %18 : vector<8x128xf32> to vector<8x128xbf16>
    %21 = tpu.concatenate %19, %3 in 1 : vector<8x128xbf16>, vector<8x128xbf16> -> vector<8x256xbf16>
    %c512 = arith.constant 512 : index
    %c0_9 = arith.constant 0 : index
    %22 = vector.load %arg1[%c512, %c0_9] : memref<1408x128xbf16, #tpu.memory_space<vmem>>, vector<256x128xbf16>
    %cst_10 = arith.constant dense<0.000000e+00> : vector<8x128xf32>
    %23 = tpu.matmul %21, %22, %cst_10 {dimension_numbers = #tpu.dot_dimension_numbers<[1], [0], [0], [1], [0, 0, 1, 1], [], []>} : vector<8x256xbf16>, vector<256x128xbf16>, vector<8x128xf32> -> vector<8x128xf32>
    %c32 = arith.constant 32 : index
    %c0_11 = arith.constant 0 : index
    %24 = vector.load %arg2[%c32, %c0_11] : memref<72x128xf32, #tpu.memory_space<vmem>>, vector<1x128xf32>
    %25 = vector.broadcast %24 : vector<1x128xf32> to vector<8x128xf32>
    %26 = arith.addf %23, %25 : vector<8x128xf32>
    %cst_12 = arith.constant 0.000000e+00 : f32
    %27 = vector.broadcast %cst_12 : f32 to vector<8x128xf32>
    %28 = arith.maximumf %26, %27 : vector<8x128xf32>
    %29 = arith.truncf %28 : vector<8x128xf32> to vector<8x128xbf16>
    %c768 = arith.constant 768 : index
    %c0_13 = arith.constant 0 : index
    %30 = vector.load %arg1[%c768, %c0_13] : memref<1408x128xbf16, #tpu.memory_space<vmem>>, vector<128x128xbf16>
    %cst_14 = arith.constant dense<0.000000e+00> : vector<8x128xf32>
    %31 = tpu.matmul %29, %30, %cst_14 {dimension_numbers = #tpu.dot_dimension_numbers<[1], [0], [0], [1], [0, 0, 1, 1], [], []>} : vector<8x128xbf16>, vector<128x128xbf16>, vector<8x128xf32> -> vector<8x128xf32>
    %c40 = arith.constant 40 : index
    %c0_15 = arith.constant 0 : index
    %32 = vector.load %arg2[%c40, %c0_15] : memref<72x128xf32, #tpu.memory_space<vmem>>, vector<1x128xf32>
    %33 = vector.broadcast %32 : vector<1x128xf32> to vector<8x128xf32>
    %34 = arith.addf %31, %33 : vector<8x128xf32>
    %35 = tpu.concatenate %19, %20 in 1 : vector<8x128xbf16>, vector<8x128xbf16> -> vector<8x256xbf16>
    %c896 = arith.constant 896 : index
    %c0_16 = arith.constant 0 : index
    %36 = vector.load %arg1[%c896, %c0_16] : memref<1408x128xbf16, #tpu.memory_space<vmem>>, vector<256x128xbf16>
    %cst_17 = arith.constant dense<0.000000e+00> : vector<8x128xf32>
    %37 = tpu.matmul %35, %36, %cst_17 {dimension_numbers = #tpu.dot_dimension_numbers<[1], [0], [0], [1], [0, 0, 1, 1], [], []>} : vector<8x256xbf16>, vector<256x128xbf16>, vector<8x128xf32> -> vector<8x128xf32>
    %c48 = arith.constant 48 : index
    %c0_18 = arith.constant 0 : index
    %38 = vector.load %arg2[%c48, %c0_18] : memref<72x128xf32, #tpu.memory_space<vmem>>, vector<1x128xf32>
    %39 = vector.broadcast %38 : vector<1x128xf32> to vector<8x128xf32>
    %40 = arith.addf %37, %39 : vector<8x128xf32>
    %cst_19 = arith.constant 0.000000e+00 : f32
    %41 = vector.broadcast %cst_19 : f32 to vector<8x128xf32>
    %42 = arith.maximumf %40, %41 : vector<8x128xf32>
    %43 = arith.truncf %42 : vector<8x128xf32> to vector<8x128xbf16>
    %c1152 = arith.constant 1152 : index
    %c0_20 = arith.constant 0 : index
    %44 = vector.load %arg1[%c1152, %c0_20] : memref<1408x128xbf16, #tpu.memory_space<vmem>>, vector<128x128xbf16>
    %cst_21 = arith.constant dense<0.000000e+00> : vector<8x128xf32>
    %45 = tpu.matmul %43, %44, %cst_21 {dimension_numbers = #tpu.dot_dimension_numbers<[1], [0], [0], [1], [0, 0, 1, 1], [], []>} : vector<8x128xbf16>, vector<128x128xbf16>, vector<8x128xf32> -> vector<8x128xf32>
    %c56 = arith.constant 56 : index
    %c0_22 = arith.constant 0 : index
    %46 = vector.load %arg2[%c56, %c0_22] : memref<72x128xf32, #tpu.memory_space<vmem>>, vector<1x128xf32>
    %47 = vector.broadcast %46 : vector<1x128xf32> to vector<8x128xf32>
    %48 = arith.addf %45, %47 : vector<8x128xf32>
    %cst_23 = arith.constant 0.000000e+00 : f32
    %49 = vector.broadcast %cst_23 : f32 to vector<8x128xf32>
    %50 = arith.maximumf %48, %49 : vector<8x128xf32>
    %51 = arith.truncf %50 : vector<8x128xf32> to vector<8x128xbf16>
    %c1280 = arith.constant 1280 : index
    %c0_24 = arith.constant 0 : index
    %52 = vector.load %arg1[%c1280, %c0_24] : memref<1408x128xbf16, #tpu.memory_space<vmem>>, vector<128x128xbf16>
    %cst_25 = arith.constant dense<0.000000e+00> : vector<8x128xf32>
    %53 = tpu.matmul %51, %52, %cst_25 {dimension_numbers = #tpu.dot_dimension_numbers<[1], [0], [0], [1], [0, 0, 1, 1], [], []>} : vector<8x128xbf16>, vector<128x128xbf16>, vector<8x128xf32> -> vector<8x128xf32>
    %c64 = arith.constant 64 : index
    %c0_26 = arith.constant 0 : index
    %54 = vector.load %arg2[%c64, %c0_26] : memref<72x128xf32, #tpu.memory_space<vmem>>, vector<1x128xf32>
    %55 = vector.broadcast %54 : vector<1x128xf32> to vector<8x128xf32>
    %56 = arith.addf %53, %55 : vector<8x128xf32>
    %57 = tpu.concatenate %17, %34, %18 in 0 : vector<8x128xf32>, vector<8x128xf32>, vector<8x128xf32> -> vector<24x128xf32>
    %58 = arith.truncf %57 : vector<24x128xf32> to vector<24x128xbf16>
    %c256 = arith.constant 256 : index
    %c0_27 = arith.constant 0 : index
    %59 = vector.load %arg1[%c256, %c0_27] : memref<1408x128xbf16, #tpu.memory_space<vmem>>, vector<128x128xbf16>
    %cst_28 = arith.constant dense<0.000000e+00> : vector<24x128xf32>
    %60 = tpu.matmul %58, %59, %cst_28 {dimension_numbers = #tpu.dot_dimension_numbers<[1], [0], [0], [1], [0, 0, 1, 1], [], []>} : vector<24x128xbf16>, vector<128x128xbf16>, vector<24x128xf32> -> vector<24x128xf32>
    %c16 = arith.constant 16 : index
    %c0_29 = arith.constant 0 : index
    %61 = vector.load %arg2[%c16, %c0_29] : memref<72x128xf32, #tpu.memory_space<vmem>>, vector<1x128xf32>
    %62 = vector.broadcast %61 : vector<1x128xf32> to vector<24x128xf32>
    %63 = arith.addf %60, %62 : vector<24x128xf32>
    %cst_30 = arith.constant 0.000000e+00 : f32
    %64 = vector.broadcast %cst_30 : f32 to vector<24x128xf32>
    %65 = arith.maximumf %63, %64 : vector<24x128xf32>
    %66 = arith.truncf %65 : vector<24x128xf32> to vector<24x128xbf16>
    %c384 = arith.constant 384 : index
    %c0_31 = arith.constant 0 : index
    %67 = vector.load %arg1[%c384, %c0_31] : memref<1408x128xbf16, #tpu.memory_space<vmem>>, vector<128x128xbf16>
    %cst_32 = arith.constant dense<0.000000e+00> : vector<24x128xf32>
    %68 = tpu.matmul %66, %67, %cst_32 {dimension_numbers = #tpu.dot_dimension_numbers<[1], [0], [0], [1], [0, 0, 1, 1], [], []>} : vector<24x128xbf16>, vector<128x128xbf16>, vector<24x128xf32> -> vector<24x128xf32>
    %c24 = arith.constant 24 : index
    %c0_33 = arith.constant 0 : index
    %69 = vector.load %arg2[%c24, %c0_33] : memref<72x128xf32, #tpu.memory_space<vmem>>, vector<1x128xf32>
    %70 = vector.broadcast %69 : vector<1x128xf32> to vector<24x128xf32>
    %71 = arith.addf %68, %70 : vector<24x128xf32>
    %c0_34 = arith.constant 0 : index
    %c0_35 = arith.constant 0 : index
    %72 = vector.load %arg3[%c0_34, %c0_35] : memref<8x896xf32, #tpu.memory_space<vmem>>, vector<8x128xf32>
    tpu.vector_store %arg3[%c0_34, %c0_35], %17 {strides = array<i32>} : memref<8x896xf32, #tpu.memory_space<vmem>>, vector<8x128xf32>,
    %c0_36 = arith.constant 0 : index
    %c128_37 = arith.constant 128 : index
    %73 = vector.load %arg3[%c0_36, %c128_37] : memref<8x896xf32, #tpu.memory_space<vmem>>, vector<8x128xf32>
    tpu.vector_store %arg3[%c0_36, %c128_37], %18 {strides = array<i32>} : memref<8x896xf32, #tpu.memory_space<vmem>>, vector<8x128xf32>,
    %c0_38 = arith.constant 0 : index
    %c256_39 = arith.constant 256 : index
    %74 = vector.load %arg3[%c0_38, %c256_39] : memref<8x896xf32, #tpu.memory_space<vmem>>, vector<8x128xf32>
    tpu.vector_store %arg3[%c0_38, %c256_39], %34 {strides = array<i32>} : memref<8x896xf32, #tpu.memory_space<vmem>>, vector<8x128xf32>,
    %c0_40 = arith.constant 0 : index
    %c384_41 = arith.constant 384 : index
    %75 = vector.load %arg3[%c0_40, %c384_41] : memref<8x896xf32, #tpu.memory_space<vmem>>, vector<8x128xf32>
    tpu.vector_store %arg3[%c0_40, %c384_41], %56 {strides = array<i32>} : memref<8x896xf32, #tpu.memory_space<vmem>>, vector<8x128xf32>,
    %76 = vector.extract_strided_slice %71 {offsets = [0, 0], sizes = [8, 128], strides = [1, 1]} : vector<24x128xf32> to vector<8x128xf32>
    %c0_42 = arith.constant 0 : index
    %c512_43 = arith.constant 512 : index
    %77 = vector.load %arg3[%c0_42, %c512_43] : memref<8x896xf32, #tpu.memory_space<vmem>>, vector<8x128xf32>
    tpu.vector_store %arg3[%c0_42, %c512_43], %76 {strides = array<i32>} : memref<8x896xf32, #tpu.memory_space<vmem>>, vector<8x128xf32>,
    %78 = vector.extract_strided_slice %71 {offsets = [16, 0], sizes = [8, 128], strides = [1, 1]} : vector<24x128xf32> to vector<8x128xf32>
    %c0_44 = arith.constant 0 : index
    %c640 = arith.constant 640 : index
    %79 = vector.load %arg3[%c0_44, %c640] : memref<8x896xf32, #tpu.memory_space<vmem>>, vector<8x128xf32>
    tpu.vector_store %arg3[%c0_44, %c640], %78 {strides = array<i32>} : memref<8x896xf32, #tpu.memory_space<vmem>>, vector<8x128xf32>,
    %80 = vector.extract_strided_slice %71 {offsets = [8, 0], sizes = [8, 128], strides = [1, 1]} : vector<24x128xf32> to vector<8x128xf32>
    %c0_45 = arith.constant 0 : index
    %c768_46 = arith.constant 768 : index
    %81 = vector.load %arg3[%c0_45, %c768_46] : memref<8x896xf32, #tpu.memory_space<vmem>>, vector<8x128xf32>
    tpu.vector_store %arg3[%c0_45, %c768_46], %80 {strides = array<i32>} : memref<8x896xf32, #tpu.memory_space<vmem>>, vector<8x128xf32>,
    return
  }
}

</mosaic_0001>

<llo_original>
// kernel: upn_forward.1
$region0: #{upn_forward.1}
  #allocation0 [shape = 'u32[]', space=smem, size = 0x4, offset = 0x4, fixed_abs, tag = 'smem constant byte address 0x4 - core index']
  #allocation1 [shape = 'u32[144,128]{1,0:T(1,128)}', space=vmem, size = 0x12000, scoped, tag = 'internal scratch']
  %s0 = inlined_call_operand.vmem [shape: f32[24,128], index: 0, kind: input, shape index: {}]
  %s1 = inlined_call_operand.hbm [shape: bf16[1408,128], index: 1, kind: input, shape index: {}]
  %s2 = inlined_call_operand.hbm [shape: f32[72,128], index: 2, kind: input, shape index: {}]
  %s3 = inlined_call_operand.vmem [shape: f32[8,896], index: 3, kind: output, shape index: {}]
  %s4 = sld [smem:[#allocation0]]
  $region30: #{upn_forward.1} parent=0
    _
  %s6 = ssub.s32 1, %s4
  %s7 = scalar_select 0, %s6, %s4
  $region1: #{upn_forward.1} parent=0
    #allocation2 [shape = 'u8[360448]{0}', space=vmem, size = 0x58000, scoped, tag = 'input window, operand 1, single buffered']
    #allocation3 [shape = 's32[1]{0}', space=sflag, size = 0x4, scoped, tag = 'scoped memory for upn_forward.1']
    #allocation4 [shape = 'u8[36864]{0}', space=vmem, size = 0x9000, scoped, tag = 'input window, operand 2, single buffered']
    #allocation5 [shape = 's32[1]{0}', space=sflag, size = 0x4, scoped, tag = 'scoped memory for upn_forward.1']
    %8 = vsyncpa [#allocation3], 0
    %9 = vsyncpa [#allocation5], 0
    // Predicated region
    $region2: #{upn_forward.1} parent=1 // pred_check
      _
    $region3: #{upn_forward.1} parent=1 // pred_check_branch
      %11 = sbr.rel (0) target = $region5
    $region4: #{upn_forward.1} parent=1 // pred_region
      _
    $region5: #{upn_forward.1} parent=1 // pred_fallthru
      _
    // Predicated region
    $region6: #{upn_forward.1} parent=1 // pred_check
      _
    $region7: #{upn_forward.1} parent=1 // pred_check_branch
      %13 = sbr.rel (0) target = $region9
    $region8: #{upn_forward.1} parent=1 // pred_region
      %s15 = ssub.s32 11264, 11264
      %16 = vsyncadd [#allocation3], %s15
      %s17 = sshll.u32 [#allocation2], 4
      %s18 = int_to_ptr.vmem [resolvable:$true] %s17
      %23 = dma.hbm_to_vmem [thread:$0]  %s1, 11264, %s18, [#allocation3], 64, 64, 4
    $region9: #{upn_forward.1} parent=1 // pred_fallthru
      _
    // Predicated region
    $region10: #{upn_forward.1} parent=1 // pred_check
      _
    $region11: #{upn_forward.1} parent=1 // pred_check_branch
      %25 = sbr.rel (0) target = $region13
    $region12: #{upn_forward.1} parent=1 // pred_region
      %s27 = ssub.s32 1152, 1152
      %28 = vsyncadd [#allocation5], %s27
      %s29 = sshll.u32 [#allocation4], 4
      %s30 = int_to_ptr.vmem [resolvable:$true] %s29
      %35 = dma.hbm_to_vmem [thread:$0]  %s2, 1152, %s30, [#allocation5], 128, 128, 8
    $region13: #{upn_forward.1} parent=1 // pred_fallthru
      _
    // Predicated region
    $region14: #{upn_forward.1} parent=1 // pred_check
      _
    $region15: #{upn_forward.1} parent=1 // pred_check_branch
      %37 = sbr.rel (0) target = $region17
    $region16: #{upn_forward.1} parent=1 // pred_region
      %38 = dma.done [#allocation3], 11264
    $region17: #{upn_forward.1} parent=1 // pred_fallthru
      _
    // Predicated region
    $region18: #{upn_forward.1} parent=1 // pred_check
      _
    $region19: #{upn_forward.1} parent=1 // pred_check_branch
      %40 = sbr.rel (0) target = $region21
    $region20: #{upn_forward.1} parent=1 // pred_region
      %41 = dma.done [#allocation5], 1152
    $region21: #{upn_forward.1} parent=1 // pred_fallthru
      _
    %v43 = vld [vmem:[%s0] sm:$0xff]
    %v44 = vld [vmem:[%s0 + $0x8] sm:$0xff]
    %v45 = vld [vmem:[%s0 + $0x10] sm:$0xff]
    %v46 = vpack.c.bf16 %v44, %v43
    %v47 = vpack.c.bf16 %v45, %v45
    %v48 = vld [vmem:[#allocation2] sm:$0xf]
    %v49 = vld [vmem:[#allocation2 + $0x4] sm:$0xf]
    %v50 = vld [vmem:[#allocation2 + $0x8] sm:$0xf]
    %v51 = vld [vmem:[#allocation2 + $0xc] sm:$0xf]
    %v52 = vld [vmem:[#allocation2 + $0x10] sm:$0xf]
    %v53 = vld [vmem:[#allocation2 + $0x14] sm:$0xf]
    %v54 = vld [vmem:[#allocation2 + $0x18] sm:$0xf]
    %v55 = vld [vmem:[#allocation2 + $0x1c] sm:$0xf]
    %v56 = vld [vmem:[#allocation2 + $0x20] sm:$0xf]
    %v57 = vld [vmem:[#allocation2 + $0x24] sm:$0xf]
    %v58 = vld [vmem:[#allocation2 + $0x28] sm:$0xf]
    %v59 = vld [vmem:[#allocation2 + $0x2c] sm:$0xf]
    %v60 = vld [vmem:[#allocation2 + $0x30] sm:$0xf]
    %v61 = vld [vmem:[#allocation2 + $0x34] sm:$0xf]
    %v62 = vld [vmem:[#allocation2 + $0x38] sm:$0xf]
    %v63 = vld [vmem:[#allocation2 + $0x3c] sm:$0xf]
    %v64 = vld [vmem:[#allocation4] sm:$0x1]
    %v65 = vlaneseq
    %v66 = vshrl.u32 %v65, 7
    %v67 = vsub.s32 0, %v66
    %v68 = vrot.slane %v64, %v67
    %v85 = vunpack.c.l.b16 %v48
    %v86 = vunpack.c.l.b16 %v49
    %v87 = vunpack.c.l.b16 %v50
    %v88 = vunpack.c.l.b16 %v51
    %v89 = vunpack.c.l.b16 %v52
    %v90 = vunpack.c.l.b16 %v53
    %v91 = vunpack.c.l.b16 %v54
    %v92 = vunpack.c.l.b16 %v55
    %v93 = vunpack.c.l.b16 %v56
    %v94 = vunpack.c.l.b16 %v57
    %v95 = vunpack.c.l.b16 %v58
    %v96 = vunpack.c.l.b16 %v59
    %v97 = vunpack.c.l.b16 %v60
    %v98 = vunpack.c.l.b16 %v61
    %v99 = vunpack.c.l.b16 %v62
    %v100 = vunpack.c.l.b16 %v63
    %v101 = vpack.c.b16 %v86, %v85
    %v102 = vpack.c.b16 %v88, %v87
    %v103 = vpack.c.b16 %v90, %v89
    %v104 = vpack.c.b16 %v92, %v91
    %v105 = vpack.c.b16 %v94, %v93
    %v106 = vpack.c.b16 %v96, %v95
    %v107 = vpack.c.b16 %v98, %v97
    %v108 = vpack.c.b16 %v100, %v99
    %117 = vmatprep.subr.bf16.mxu0 0
    %118 = vmatpush1.bf16.msra.mxu0 %v101
    %119 = vmatprep.subr.bf16.mxu0 0
    %120 = vmatpush1.bf16.msra.mxu0 %v102
    %121 = vmatprep.subr.bf16.mxu0 0
    %122 = vmatpush1.bf16.msra.mxu0 %v103
    %123 = vmatprep.subr.bf16.mxu0 0
    %124 = vmatpush1.bf16.msra.mxu0 %v104
    %125 = vmatprep.subr.bf16.mxu0 0
    %126 = vmatpush1.bf16.msra.mxu0 %v105
    %127 = vmatprep.subr.bf16.mxu0 0
    %128 = vmatpush1.bf16.msra.mxu0 %v106
    %129 = vmatprep.subr.bf16.mxu0 0
    %130 = vmatpush1.bf16.msra.mxu0 %v107
    %131 = vmatprep.subr.bf16.mxu0 0
    %132 = vmatpush1.bf16.msra.mxu0 %v108
    %133 = vmatprep.subr.bf16.mxu0 0
    %134 = vmatpush1.bf16.msra.mxu0 0
    %135 = vmatprep.subr.bf16.mxu0 0
    %136 = vmatpush1.bf16.msra.mxu0 0
    %137 = vmatprep.subr.bf16.mxu0 0
    %138 = vmatpush1.bf16.msra.mxu0 0
    %139 = vmatprep.subr.bf16.mxu0 0
    %140 = vmatpush1.bf16.msra.mxu0 0
    %141 = vmatprep.subr.bf16.mxu0 0
    %142 = vmatpush1.bf16.msra.mxu0 0
    %143 = vmatprep.subr.bf16.mxu0 0
    %144 = vmatpush1.bf16.msra.mxu0 0
    %145 = vmatprep.subr.bf16.mxu0 0
    %146 = vmatpush1.bf16.msra.mxu0 0
    %147 = vmatprep.subr.bf16.mxu0 0
    %148 = vmatpush1.bf16.msra.mxu0 0
    %149 = vmatprep.mubr.bf16.mxu0 0
    %150 = vmatmul.mubr.bf16.gmra.mrb[0].mxu0 %v46
    %v151 = vpop.f32.mrb[0].mxu0
    %v152 = vadd.f32 %v68, %v151
    %v153 = vpop.f32.mrb[0].mxu0
    %v154 = vpop.f32.mrb[0].mxu0
    %v155 = vadd.f32 %v68, %v154
    %v156 = vpop.f32.mrb[0].mxu0
    %157 = vdwg.mxu0
    %v158 = vmax.f32 %v152, 0.0
    %v159 = vmax.f32 %v155, 0.0
    %v160 = vpack.c.bf16 %v159, %v158
    %v161 = vld [vmem:[#allocation2 + $0x40] sm:$0xf]
    %v162 = vld [vmem:[#allocation2 + $0x44] sm:$0xf]
    %v163 = vld [vmem:[#allocation2 + $0x48] sm:$0xf]
    %v164 = vld [vmem:[#allocation2 + $0x4c] sm:$0xf]
    %v165 = vld [vmem:[#allocation2 + $0x50] sm:$0xf]
    %v166 = vld [vmem:[#allocation2 + $0x54] sm:$0xf]
    %v167 = vld [vmem:[#allocation2 + $0x58] sm:$0xf]
    %v168 = vld [vmem:[#allocation2 + $0x5c] sm:$0xf]
    %v169 = vld [vmem:[#allocation2 + $0x60] sm:$0xf]
    %v170 = vld [vmem:[#allocation2 + $0x64] sm:$0xf]
    %v171 = vld [vmem:[#allocation2 + $0x68] sm:$0xf]
    %v172 = vld [vmem:[#allocation2 + $0x6c] sm:$0xf]
    %v173 = vld [vmem:[#allocation2 + $0x70] sm:$0xf]
    %v174 = vld [vmem:[#allocation2 + $0x74] sm:$0xf]
    %v175 = vld [vmem:[#allocation2 + $0x78] sm:$0xf]
    %v176 = vld [vmem:[#allocation2 + $0x7c] sm:$0xf]
    %v177 = vld [vmem:[#allocation4 + $0x8] sm:$0x1]
    %v178 = vlaneseq
    %v179 = vshrl.u32 %v178, 7
    %v180 = vsub.s32 0, %v179
    %v181 = vrot.slane %v177, %v180
    %v198 = vunpack.c.l.b16 %v161
    %v199 = vunpack.c.l.b16 %v162
    %v200 = vunpack.c.l.b16 %v163
    %v201 = vunpack.c.l.b16 %v164
    %v202 = vunpack.c.l.b16 %v165
    %v203 = vunpack.c.l.b16 %v166
    %v204 = vunpack.c.l.b16 %v167
    %v205 = vunpack.c.l.b16 %v168
    %v206 = vunpack.c.l.b16 %v169
    %v207 = vunpack.c.l.b16 %v170
    %v208 = vunpack.c.l.b16 %v171
    %v209 = vunpack.c.l.b16 %v172
    %v210 = vunpack.c.l.b16 %v173
    %v211 = vunpack.c.l.b16 %v174
    %v212 = vunpack.c.l.b16 %v175
    %v213 = vunpack.c.l.b16 %v176
    %v214 = vpack.c.b16 %v199, %v198
    %v215 = vpack.c.b16 %v201, %v200
    %v216 = vpack.c.b16 %v203, %v202
    %v217 = vpack.c.b16 %v205, %v204
    %v218 = vpack.c.b16 %v207, %v206
    %v219 = vpack.c.b16 %v209, %v208
    %v220 = vpack.c.b16 %v211, %v210
    %v221 = vpack.c.b16 %v213, %v212
    %230 = vmatprep.subr.bf16.mxu0 0
    %231 = vmatpush1.bf16.msra.mxu0 %v214
    %232 = vmatprep.subr.bf16.mxu0 0
    %233 = vmatpush1.bf16.msra.mxu0 %v215
    %234 = vmatprep.subr.bf16.mxu0 0
    %235 = vmatpush1.bf16.msra.mxu0 %v216
    %236 = vmatprep.subr.bf16.mxu0 0
    %237 = vmatpush1.bf16.msra.mxu0 %v217
    %238 = vmatprep.subr.bf16.mxu0 0
    %239 = vmatpush1.bf16.msra.mxu0 %v218
    %240 = vmatprep.subr.bf16.mxu0 0
    %241 = vmatpush1.bf16.msra.mxu0 %v219
    %242 = vmatprep.subr.bf16.mxu0 0
    %243 = vmatpush1.bf16.msra.mxu0 %v220
    %244 = vmatprep.subr.bf16.mxu0 0
    %245 = vmatpush1.bf16.msra.mxu0 %v221
    %246 = vmatprep.subr.bf16.mxu0 0
    %247 = vmatpush1.bf16.msra.mxu0 0
    %248 = vmatprep.subr.bf16.mxu0 0
    %249 = vmatpush1.bf16.msra.mxu0 0
    %250 = vmatprep.subr.bf16.mxu0 0
    %251 = vmatpush1.bf16.msra.mxu0 0
    %252 = vmatprep.subr.bf16.mxu0 0
    %253 = vmatpush1.bf16.msra.mxu0 0
    %254 = vmatprep.subr.bf16.mxu0 0
    %255 = vmatpush1.bf16.msra.mxu0 0
    %256 = vmatprep.subr.bf16.mxu0 0
    %257 = vmatpush1.bf16.msra.mxu0 0
    %258 = vmatprep.subr.bf16.mxu0 0
    %259 = vmatpush1.bf16.msra.mxu0 0
    %260 = vmatprep.subr.bf16.mxu0 0
    %261 = vmatpush1.bf16.msra.mxu0 0
    %262 = vmatprep.mubr.bf16.mxu0 0
    %263 = vmatmul.mubr.bf16.gmra.mrb[0].mxu0 %v160
    %v264 = vpop.f32.mrb[0].mxu0
    %v265 = vadd.f32 %v181, %v264
    %v266 = vpop.f32.mrb[0].mxu0
    %v267 = vpop.f32.mrb[0].mxu0
    %v268 = vadd.f32 %v181, %v267
    %v269 = vpop.f32.mrb[0].mxu0
    %270 = vdwg.mxu0
    %v271 = vpack.c.bf16 %v265, %v265
    %v272 = vpack.c.bf16 %v268, %v268
    %v273 = vld [vmem:[#allocation2 + $0x100] sm:$0xf]
    %v274 = vld [vmem:[#allocation2 + $0x104] sm:$0xf]
    %v275 = vld [vmem:[#allocation2 + $0x108] sm:$0xf]
    %v276 = vld [vmem:[#allocation2 + $0x10c] sm:$0xf]
    %v277 = vld [vmem:[#allocation2 + $0x110] sm:$0xf]
    %v278 = vld [vmem:[#allocation2 + $0x114] sm:$0xf]
    %v279 = vld [vmem:[#allocation2 + $0x118] sm:$0xf]
    %v280 = vld [vmem:[#allocation2 + $0x11c] sm:$0xf]
    %v281 = vld [vmem:[#allocation2 + $0x120] sm:$0xf]
    %v282 = vld [vmem:[#allocation2 + $0x124] sm:$0xf]
    %v283 = vld [vmem:[#allocation2 + $0x128] sm:$0xf]
    %v284 = vld [vmem:[#allocation2 + $0x12c] sm:$0xf]
    %v285 = vld [vmem:[#allocation2 + $0x130] sm:$0xf]
    %v286 = vld [vmem:[#allocation2 + $0x134] sm:$0xf]
    %v287 = vld [vmem:[#allocation2 + $0x138] sm:$0xf]
    %v288 = vld [vmem:[#allocation2 + $0x13c] sm:$0xf]
    %v289 = vld [vmem:[#allocation2 + $0x140] sm:$0xf]
    %v290 = vld [vmem:[#allocation2 + $0x144] sm:$0xf]
    %v291 = vld [vmem:[#allocation2 + $0x148] sm:$0xf]
    %v292 = vld [vmem:[#allocation2 + $0x14c] sm:$0xf]
    %v293 = vld [vmem:[#allocation2 + $0x150] sm:$0xf]
    %v294 = vld [vmem:[#allocation2 + $0x154] sm:$0xf]
    %v295 = vld [vmem:[#allocation2 + $0x158] sm:$0xf]
    %v296 = vld [vmem:[#allocation2 + $0x15c] sm:$0xf]
    %v297 = vld [vmem:[#allocation2 + $0x160] sm:$0xf]
    %v298 = vld [vmem:[#allocation2 + $0x164] sm:$0xf]
    %v299 = vld [vmem:[#allocation2 + $0x168] sm:$0xf]
    %v300 = vld [vmem:[#allocation2 + $0x16c] sm:$0xf]
    %v301 = vld [vmem:[#allocation2 + $0x170] sm:$0xf]
    %v302 = vld [vmem:[#allocation2 + $0x174] sm:$0xf]
    %v303 = vld [vmem:[#allocation2 + $0x178] sm:$0xf]
    %v304 = vld [vmem:[#allocation2 + $0x17c] sm:$0xf]
    %v305 = vld [vmem:[#allocation4 + $0x20] sm:$0x1]
    %v306 = vlaneseq
    %v307 = vshrl.u32 %v306, 7
    %v308 = vsub.s32 0, %v307
    %v309 = vrot.slane %v305, %v308
    %v342 = vunpack.c.l.b16 %v273
    %v343 = vunpack.c.l.b16 %v274
    %v344 = vunpack.c.l.b16 %v275
    %v345 = vunpack.c.l.b16 %v276
    %v346 = vunpack.c.l.b16 %v277
    %v347 = vunpack.c.l.b16 %v278
    %v348 = vunpack.c.l.b16 %v279
    %v349 = vunpack.c.l.b16 %v280
    %v350 = vunpack.c.l.b16 %v281
    %v351 = vunpack.c.l.b16 %v282
    %v352 = vunpack.c.l.b16 %v283
    %v353 = vunpack.c.l.b16 %v284
    %v354 = vunpack.c.l.b16 %v285
    %v355 = vunpack.c.l.b16 %v286
    %v356 = vunpack.c.l.b16 %v287
    %v357 = vunpack.c.l.b16 %v288
    %v358 = vunpack.c.l.b16 %v289
    %v359 = vunpack.c.l.b16 %v290
    %v360 = vunpack.c.l.b16 %v291
    %v361 = vunpack.c.l.b16 %v292
    %v362 = vunpack.c.l.b16 %v293
    %v363 = vunpack.c.l.b16 %v294
    %v364 = vunpack.c.l.b16 %v295
    %v365 = vunpack.c.l.b16 %v296
    %v366 = vunpack.c.l.b16 %v297
    %v367 = vunpack.c.l.b16 %v298
    %v368 = vunpack.c.l.b16 %v299
    %v369 = vunpack.c.l.b16 %v300
    %v370 = vunpack.c.l.b16 %v301
    %v371 = vunpack.c.l.b16 %v302
    %v372 = vunpack.c.l.b16 %v303
    %v373 = vunpack.c.l.b16 %v304
    %v374 = vpack.c.b16 %v343, %v342
    %v375 = vpack.c.b16 %v345, %v344
    %v376 = vpack.c.b16 %v347, %v346
    %v377 = vpack.c.b16 %v349, %v348
    %v378 = vpack.c.b16 %v351, %v350
    %v379 = vpack.c.b16 %v353, %v352
    %v380 = vpack.c.b16 %v355, %v354
    %v381 = vpack.c.b16 %v357, %v356
    %v382 = vpack.c.b16 %v359, %v358
    %v383 = vpack.c.b16 %v361, %v360
    %v384 = vpack.c.b16 %v363, %v362
    %v385 = vpack.c.b16 %v365, %v364
    %v386 = vpack.c.b16 %v367, %v366
    %v387 = vpack.c.b16 %v369, %v368
    %v388 = vpack.c.b16 %v371, %v370
    %v389 = vpack.c.b16 %v373, %v372
    %406 = vmatprep.subr.bf16.mxu0 0
    %407 = vmatpush1.bf16.msra.mxu0 %v374
    %408 = vmatprep.subr.bf16.mxu0 0
    %409 = vmatpush1.bf16.msra.mxu0 %v375
    %410 = vmatprep.subr.bf16.mxu0 0
    %411 = vmatpush1.bf16.msra.mxu0 %v376
    %412 = vmatprep.subr.bf16.mxu0 0
    %413 = vmatpush1.bf16.msra.mxu0 %v377
    %414 = vmatprep.subr.bf16.mxu0 0
    %415 = vmatpush1.bf16.msra.mxu0 %v378
    %416 = vmatprep.subr.bf16.mxu0 0
    %417 = vmatpush1.bf16.msra.mxu0 %v379
    %418 = vmatprep.subr.bf16.mxu0 0
    %419 = vmatpush1.bf16.msra.mxu0 %v380
    %420 = vmatprep.subr.bf16.mxu0 0
    %421 = vmatpush1.bf16.msra.mxu0 %v381
    %422 = vmatprep.subr.bf16.mxu0 0
    %423 = vmatpush1.bf16.msra.mxu0 %v382
    %424 = vmatprep.subr.bf16.mxu0 0
    %425 = vmatpush1.bf16.msra.mxu0 %v383
    %426 = vmatprep.subr.bf16.mxu0 0
    %427 = vmatpush1.bf16.msra.mxu0 %v384
    %428 = vmatprep.subr.bf16.mxu0 0
    %429 = vmatpush1.bf16.msra.mxu0 %v385
    %430 = vmatprep.subr.bf16.mxu0 0
    %431 = vmatpush1.bf16.msra.mxu0 %v386
    %432 = vmatprep.subr.bf16.mxu0 0
    %433 = vmatpush1.bf16.msra.mxu0 %v387
    %434 = vmatprep.subr.bf16.mxu0 0
    %435 = vmatpush1.bf16.msra.mxu0 %v388
    %436 = vmatprep.subr.bf16.mxu0 0
    %437 = vmatpush1.bf16.msra.mxu0 %v389
    %438 = vmatprep.mubr.bf16.mxu0 %v47
    %439 = vmatmul.mubr.bf16.gmra.mrb[0].mxu0 %v271
    %v440 = vpop.f32.mrb[0].mxu0
    %v441 = vadd.f32 %v309, %v440
    %v442 = vpop.f32.mrb[0].mxu0
    %v443 = vpop.f32.mrb[0].mxu0
    %v444 = vpop.f32.mrb[0].mxu0
    %445 = vdwg.mxu0
    %v446 = vmax.f32 %v441, 0.0
    %v447 = vpack.c.bf16 %v446, %v446
    %v448 = vld [vmem:[#allocation2 + $0x180] sm:$0xf]
    %v449 = vld [vmem:[#allocation2 + $0x184] sm:$0xf]
    %v450 = vld [vmem:[#allocation2 + $0x188] sm:$0xf]
    %v451 = vld [vmem:[#allocation2 + $0x18c] sm:$0xf]
    %v452 = vld [vmem:[#allocation2 + $0x190] sm:$0xf]
    %v453 = vld [vmem:[#allocation2 + $0x194] sm:$0xf]
    %v454 = vld [vmem:[#allocation2 + $0x198] sm:$0xf]
    %v455 = vld [vmem:[#allocation2 + $0x19c] sm:$0xf]
    %v456 = vld [vmem:[#allocation2 + $0x1a0] sm:$0xf]
    %v457 = vld [vmem:[#allocation2 + $0x1a4] sm:$0xf]
    %v458 = vld [vmem:[#allocation2 + $0x1a8] sm:$0xf]
    %v459 = vld [vmem:[#allocation2 + $0x1ac] sm:$0xf]
    %v460 = vld [vmem:[#allocation2 + $0x1b0] sm:$0xf]
    %v461 = vld [vmem:[#allocation2 + $0x1b4] sm:$0xf]
    %v462 = vld [vmem:[#allocation2 + $0x1b8] sm:$0xf]
    %v463 = vld [vmem:[#allocation2 + $0x1bc] sm:$0xf]
    %v464 = vld [vmem:[#allocation4 + $0x28] sm:$0x1]
    %v465 = vlaneseq
    %v466 = vshrl.u32 %v465, 7
    %v467 = vsub.s32 0, %v466
    %v468 = vrot.slane %v464, %v467
    %v485 = vunpack.c.l.b16 %v448
    %v486 = vunpack.c.l.b16 %v449
    %v487 = vunpack.c.l.b16 %v450
    %v488 = vunpack.c.l.b16 %v451
    %v489 = vunpack.c.l.b16 %v452
    %v490 = vunpack.c.l.b16 %v453
    %v491 = vunpack.c.l.b16 %v454
    %v492 = vunpack.c.l.b16 %v455
    %v493 = vunpack.c.l.b16 %v456
    %v494 = vunpack.c.l.b16 %v457
    %v495 = vunpack.c.l.b16 %v458
    %v496 = vunpack.c.l.b16 %v459
    %v497 = vunpack.c.l.b16 %v460
    %v498 = vunpack.c.l.b16 %v461
    %v499 = vunpack.c.l.b16 %v462
    %v500 = vunpack.c.l.b16 %v463
    %v501 = vpack.c.b16 %v486, %v485
    %v502 = vpack.c.b16 %v488, %v487
    %v503 = vpack.c.b16 %v490, %v489
    %v504 = vpack.c.b16 %v492, %v491
    %v505 = vpack.c.b16 %v494, %v493
    %v506 = vpack.c.b16 %v496, %v495
    %v507 = vpack.c.b16 %v498, %v497
    %v508 = vpack.c.b16 %v500, %v499
    %517 = vmatprep.subr.bf16.mxu0 0
    %518 = vmatpush1.bf16.msra.mxu0 %v501
    %519 = vmatprep.subr.bf16.mxu0 0
    %520 = vmatpush1.bf16.msra.mxu0 %v502
    %521 = vmatprep.subr.bf16.mxu0 0
    %522 = vmatpush1.bf16.msra.mxu0 %v503
    %523 = vmatprep.subr.bf16.mxu0 0
    %524 = vmatpush1.bf16.msra.mxu0 %v504
    %525 = vmatprep.subr.bf16.mxu0 0
    %526 = vmatpush1.bf16.msra.mxu0 %v505
    %527 = vmatprep.subr.bf16.mxu0 0
    %528 = vmatpush1.bf16.msra.mxu0 %v506
    %529 = vmatprep.subr.bf16.mxu0 0
    %530 = vmatpush1.bf16.msra.mxu0 %v507
    %531 = vmatprep.subr.bf16.mxu0 0
    %532 = vmatpush1.bf16.msra.mxu0 %v508
    %533 = vmatprep.subr.bf16.mxu0 0
    %534 = vmatpush1.bf16.msra.mxu0 0
    %535 = vmatprep.subr.bf16.mxu0 0
    %536 = vmatpush1.bf16.msra.mxu0 0
    %537 = vmatprep.subr.bf16.mxu0 0
    %538 = vmatpush1.bf16.msra.mxu0 0
    %539 = vmatprep.subr.bf16.mxu0 0
    %540 = vmatpush1.bf16.msra.mxu0 0
    %541 = vmatprep.subr.bf16.mxu0 0
    %542 = vmatpush1.bf16.msra.mxu0 0
    %543 = vmatprep.subr.bf16.mxu0 0
    %544 = vmatpush1.bf16.msra.mxu0 0
    %545 = vmatprep.subr.bf16.mxu0 0
    %546 = vmatpush1.bf16.msra.mxu0 0
    %547 = vmatprep.subr.bf16.mxu0 0
    %548 = vmatpush1.bf16.msra.mxu0 0
    %549 = vmatprep.mubr.bf16.mxu0 0
    %550 = vmatmul.mubr.bf16.gmra.mrb[0].mxu0 %v447
    %v551 = vpop.f32.mrb[0].mxu0
    %v552 = vadd.f32 %v468, %v551
    %v553 = vpop.f32.mrb[0].mxu0
    %v554 = vpop.f32.mrb[0].mxu0
    %v555 = vpop.f32.mrb[0].mxu0
    %556 = vdwg.mxu0
    %v557 = vld [vmem:[#allocation2 + $0x1c0] sm:$0xf]
    %v558 = vld [vmem:[#allocation2 + $0x1c4] sm:$0xf]
    %v559 = vld [vmem:[#allocation2 + $0x1c8] sm:$0xf]
    %v560 = vld [vmem:[#allocation2 + $0x1cc] sm:$0xf]
    %v561 = vld [vmem:[#allocation2 + $0x1d0] sm:$0xf]
    %v562 = vld [vmem:[#allocation2 + $0x1d4] sm:$0xf]
    %v563 = vld [vmem:[#allocation2 + $0x1d8] sm:$0xf]
    %v564 = vld [vmem:[#allocation2 + $0x1dc] sm:$0xf]
    %v565 = vld [vmem:[#allocation2 + $0x1e0] sm:$0xf]
    %v566 = vld [vmem:[#allocation2 + $0x1e4] sm:$0xf]
    %v567 = vld [vmem:[#allocation2 + $0x1e8] sm:$0xf]
    %v568 = vld [vmem:[#allocation2 + $0x1ec] sm:$0xf]
    %v569 = vld [vmem:[#allocation2 + $0x1f0] sm:$0xf]
    %v570 = vld [vmem:[#allocation2 + $0x1f4] sm:$0xf]
    %v571 = vld [vmem:[#allocation2 + $0x1f8] sm:$0xf]
    %v572 = vld [vmem:[#allocation2 + $0x1fc] sm:$0xf]
    %v573 = vld [vmem:[#allocation2 + $0x200] sm:$0xf]
    %v574 = vld [vmem:[#allocation2 + $0x204] sm:$0xf]
    %v575 = vld [vmem:[#allocation2 + $0x208] sm:$0xf]
    %v576 = vld [vmem:[#allocation2 + $0x20c] sm:$0xf]
    %v577 = vld [vmem:[#allocation2 + $0x210] sm:$0xf]
    %v578 = vld [vmem:[#allocation2 + $0x214] sm:$0xf]
    %v579 = vld [vmem:[#allocation2 + $0x218] sm:$0xf]
    %v580 = vld [vmem:[#allocation2 + $0x21c] sm:$0xf]
    %v581 = vld [vmem:[#allocation2 + $0x220] sm:$0xf]
    %v582 = vld [vmem:[#allocation2 + $0x224] sm:$0xf]
    %v583 = vld [vmem:[#allocation2 + $0x228] sm:$0xf]
    %v584 = vld [vmem:[#allocation2 + $0x22c] sm:$0xf]
    %v585 = vld [vmem:[#allocation2 + $0x230] sm:$0xf]
    %v586 = vld [vmem:[#allocation2 + $0x234] sm:$0xf]
    %v587 = vld [vmem:[#allocation2 + $0x238] sm:$0xf]
    %v588 = vld [vmem:[#allocation2 + $0x23c] sm:$0xf]
    %v589 = vld [vmem:[#allocation4 + $0x30] sm:$0x1]
    %v590 = vlaneseq
    %v591 = vshrl.u32 %v590, 7
    %v592 = vsub.s32 0, %v591
    %v593 = vrot.slane %v589, %v592
    %v626 = vunpack.c.l.b16 %v557
    %v627 = vunpack.c.l.b16 %v558
    %v628 = vunpack.c.l.b16 %v559
    %v629 = vunpack.c.l.b16 %v560
    %v630 = vunpack.c.l.b16 %v561
    %v631 = vunpack.c.l.b16 %v562
    %v632 = vunpack.c.l.b16 %v563
    %v633 = vunpack.c.l.b16 %v564
    %v634 = vunpack.c.l.b16 %v565
    %v635 = vunpack.c.l.b16 %v566
    %v636 = vunpack.c.l.b16 %v567
    %v637 = vunpack.c.l.b16 %v568
    %v638 = vunpack.c.l.b16 %v569
    %v639 = vunpack.c.l.b16 %v570
    %v640 = vunpack.c.l.b16 %v571
    %v641 = vunpack.c.l.b16 %v572
    %v642 = vunpack.c.l.b16 %v573
    %v643 = vunpack.c.l.b16 %v574
    %v644 = vunpack.c.l.b16 %v575
    %v645 = vunpack.c.l.b16 %v576
    %v646 = vunpack.c.l.b16 %v577
    %v647 = vunpack.c.l.b16 %v578
    %v648 = vunpack.c.l.b16 %v579
    %v649 = vunpack.c.l.b16 %v580
    %v650 = vunpack.c.l.b16 %v581
    %v651 = vunpack.c.l.b16 %v582
    %v652 = vunpack.c.l.b16 %v583
    %v653 = vunpack.c.l.b16 %v584
    %v654 = vunpack.c.l.b16 %v585
    %v655 = vunpack.c.l.b16 %v586
    %v656 = vunpack.c.l.b16 %v587
    %v657 = vunpack.c.l.b16 %v588
    %v658 = vpack.c.b16 %v627, %v626
    %v659 = vpack.c.b16 %v629, %v628
    %v660 = vpack.c.b16 %v631, %v630
    %v661 = vpack.c.b16 %v633, %v632
    %v662 = vpack.c.b16 %v635, %v634
    %v663 = vpack.c.b16 %v637, %v636
    %v664 = vpack.c.b16 %v639, %v638
    %v665 = vpack.c.b16 %v641, %v640
    %v666 = vpack.c.b16 %v643, %v642
    %v667 = vpack.c.b16 %v645, %v644
    %v668 = vpack.c.b16 %v647, %v646
    %v669 = vpack.c.b16 %v649, %v648
    %v670 = vpack.c.b16 %v651, %v650
    %v671 = vpack.c.b16 %v653, %v652
    %v672 = vpack.c.b16 %v655, %v654
    %v673 = vpack.c.b16 %v657, %v656
    %690 = vmatprep.subr.bf16.mxu0 0
    %691 = vmatpush1.bf16.msra.mxu0 %v658
    %692 = vmatprep.subr.bf16.mxu0 0
    %693 = vmatpush1.bf16.msra.mxu0 %v659
    %694 = vmatprep.subr.bf16.mxu0 0
    %695 = vmatpush1.bf16.msra.mxu0 %v660
    %696 = vmatprep.subr.bf16.mxu0 0
    %697 = vmatpush1.bf16.msra.mxu0 %v661
    %698 = vmatprep.subr.bf16.mxu0 0
    %699 = vmatpush1.bf16.msra.mxu0 %v662
    %700 = vmatprep.subr.bf16.mxu0 0
    %701 = vmatpush1.bf16.msra.mxu0 %v663
    %702 = vmatprep.subr.bf16.mxu0 0
    %703 = vmatpush1.bf16.msra.mxu0 %v664
    %704 = vmatprep.subr.bf16.mxu0 0
    %705 = vmatpush1.bf16.msra.mxu0 %v665
    %706 = vmatprep.subr.bf16.mxu0 0
    %707 = vmatpush1.bf16.msra.mxu0 %v666
    %708 = vmatprep.subr.bf16.mxu0 0
    %709 = vmatpush1.bf16.msra.mxu0 %v667
    %710 = vmatprep.subr.bf16.mxu0 0
    %711 = vmatpush1.bf16.msra.mxu0 %v668
    %712 = vmatprep.subr.bf16.mxu0 0
    %713 = vmatpush1.bf16.msra.mxu0 %v669
    %714 = vmatprep.subr.bf16.mxu0 0
    %715 = vmatpush1.bf16.msra.mxu0 %v670
    %716 = vmatprep.subr.bf16.mxu0 0
    %717 = vmatpush1.bf16.msra.mxu0 %v671
    %718 = vmatprep.subr.bf16.mxu0 0
    %719 = vmatpush1.bf16.msra.mxu0 %v672
    %720 = vmatprep.subr.bf16.mxu0 0
    %721 = vmatpush1.bf16.msra.mxu0 %v673
    %722 = vmatprep.mubr.bf16.mxu0 %v272
    %723 = vmatmul.mubr.bf16.gmra.mrb[0].mxu0 %v271
    %v724 = vpop.f32.mrb[0].mxu0
    %v725 = vadd.f32 %v593, %v724
    %v726 = vpop.f32.mrb[0].mxu0
    %v727 = vpop.f32.mrb[0].mxu0
    %v728 = vpop.f32.mrb[0].mxu0
    %729 = vdwg.mxu0
    %v730 = vmax.f32 %v725, 0.0
    %v731 = vpack.c.bf16 %v730, %v730
    %v732 = vld [vmem:[#allocation2 + $0x240] sm:$0xf]
    %v733 = vld [vmem:[#allocation2 + $0x244] sm:$0xf]
    %v734 = vld [vmem:[#allocation2 + $0x248] sm:$0xf]
    %v735 = vld [vmem:[#allocation2 + $0x24c] sm:$0xf]
    %v736 = vld [vmem:[#allocation2 + $0x250] sm:$0xf]
    %v737 = vld [vmem:[#allocation2 + $0x254] sm:$0xf]
    %v738 = vld [vmem:[#allocation2 + $0x258] sm:$0xf]
    %v739 = vld [vmem:[#allocation2 + $0x25c] sm:$0xf]
    %v740 = vld [vmem:[#allocation2 + $0x260] sm:$0xf]
    %v741 = vld [vmem:[#allocation2 + $0x264] sm:$0xf]
    %v742 = vld [vmem:[#allocation2 + $0x268] sm:$0xf]
    %v743 = vld [vmem:[#allocation2 + $0x26c] sm:$0xf]
    %v744 = vld [vmem:[#allocation2 + $0x270] sm:$0xf]
    %v745 = vld [vmem:[#allocation2 + $0x274] sm:$0xf]
    %v746 = vld [vmem:[#allocation2 + $0x278] sm:$0xf]
    %v747 = vld [vmem:[#allocation2 + $0x27c] sm:$0xf]
    %v748 = vld [vmem:[#allocation4 + $0x38] sm:$0x1]
    %v749 = vlaneseq
    %v750 = vshrl.u32 %v749, 7
    %v751 = vsub.s32 0, %v750
    %v752 = vrot.slane %v748, %v751
    %v769 = vunpack.c.l.b16 %v732
    %v770 = vunpack.c.l.b16 %v733
    %v771 = vunpack.c.l.b16 %v734
    %v772 = vunpack.c.l.b16 %v735
    %v773 = vunpack.c.l.b16 %v736
    %v774 = vunpack.c.l.b16 %v737
    %v775 = vunpack.c.l.b16 %v738
    %v776 = vunpack.c.l.b16 %v739
    %v777 = vunpack.c.l.b16 %v740
    %v778 = vunpack.c.l.b16 %v741
    %v779 = vunpack.c.l.b16 %v742
    %v780 = vunpack.c.l.b16 %v743
    %v781 = vunpack.c.l.b16 %v744
    %v782 = vunpack.c.l.b16 %v745
    %v783 = vunpack.c.l.b16 %v746
    %v784 = vunpack.c.l.b16 %v747
    %v785 = vpack.c.b16 %v770, %v769
    %v786 = vpack.c.b16 %v772, %v771
    %v787 = vpack.c.b16 %v774, %v773
    %v788 = vpack.c.b16 %v776, %v775
    %v789 = vpack.c.b16 %v778, %v777
    %v790 = vpack.c.b16 %v780, %v779
    %v791 = vpack.c.b16 %v782, %v781
    %v792 = vpack.c.b16 %v784, %v783
    %801 = vmatprep.subr.bf16.mxu0 0
    %802 = vmatpush1.bf16.msra.mxu0 %v785
    %803 = vmatprep.subr.bf16.mxu0 0
    %804 = vmatpush1.bf16.msra.mxu0 %v786
    %805 = vmatprep.subr.bf16.mxu0 0
    %806 = vmatpush1.bf16.msra.mxu0 %v787
    %807 = vmatprep.subr.bf16.mxu0 0
    %808 = vmatpush1.bf16.msra.mxu0 %v788
    %809 = vmatprep.subr.bf16.mxu0 0
    %810 = vmatpush1.bf16.msra.mxu0 %v789
    %811 = vmatprep.subr.bf16.mxu0 0
    %812 = vmatpush1.bf16.msra.mxu0 %v790
    %813 = vmatprep.subr.bf16.mxu0 0
    %814 = vmatpush1.bf16.msra.mxu0 %v791
    %815 = vmatprep.subr.bf16.mxu0 0
    %816 = vmatpush1.bf16.msra.mxu0 %v792
    %817 = vmatprep.subr.bf16.mxu0 0
    %818 = vmatpush1.bf16.msra.mxu0 0
    %819 = vmatprep.subr.bf16.mxu0 0
    %820 = vmatpush1.bf16.msra.mxu0 0
    %821 = vmatprep.subr.bf16.mxu0 0
    %822 = vmatpush1.bf16.msra.mxu0 0
    %823 = vmatprep.subr.bf16.mxu0 0
    %824 = vmatpush1.bf16.msra.mxu0 0
    %825 = vmatprep.subr.bf16.mxu0 0
    %826 = vmatpush1.bf16.msra.mxu0 0
    %827 = vmatprep.subr.bf16.mxu0 0
    %828 = vmatpush1.bf16.msra.mxu0 0
    %829 = vmatprep.subr.bf16.mxu0 0
    %830 = vmatpush1.bf16.msra.mxu0 0
    %831 = vmatprep.subr.bf16.mxu0 0
    %832 = vmatpush1.bf16.msra.mxu0 0
    %833 = vmatprep.mubr.bf16.mxu0 0
    %834 = vmatmul.mubr.bf16.gmra.mrb[0].mxu0 %v731
    %v835 = vpop.f32.mrb[0].mxu0
    %v836 = vadd.f32 %v752, %v835
    %v837 = vpop.f32.mrb[0].mxu0
    %v838 = vpop.f32.mrb[0].mxu0
    %v839 = vpop.f32.mrb[0].mxu0
    %840 = vdwg.mxu0
    %v841 = vmax.f32 %v836, 0.0
    %v842 = vpack.c.bf16 %v841, %v841
    %v843 = vld [vmem:[#allocation2 + $0x280] sm:$0xf]
    %v844 = vld [vmem:[#allocation2 + $0x284] sm:$0xf]
    %v845 = vld [vmem:[#allocation2 + $0x288] sm:$0xf]
    %v846 = vld [vmem:[#allocation2 + $0x28c] sm:$0xf]
    %v847 = vld [vmem:[#allocation2 + $0x290] sm:$0xf]
    %v848 = vld [vmem:[#allocation2 + $0x294] sm:$0xf]
    %v849 = vld [vmem:[#allocation2 + $0x298] sm:$0xf]
    %v850 = vld [vmem:[#allocation2 + $0x29c] sm:$0xf]
    %v851 = vld [vmem:[#allocation2 + $0x2a0] sm:$0xf]
    %v852 = vld [vmem:[#allocation2 + $0x2a4] sm:$0xf]
    %v853 = vld [vmem:[#allocation2 + $0x2a8] sm:$0xf]
    %v854 = vld [vmem:[#allocation2 + $0x2ac] sm:$0xf]
    %v855 = vld [vmem:[#allocation2 + $0x2b0] sm:$0xf]
    %v856 = vld [vmem:[#allocation2 + $0x2b4] sm:$0xf]
    %v857 = vld [vmem:[#allocation2 + $0x2b8] sm:$0xf]
    %v858 = vld [vmem:[#allocation2 + $0x2bc] sm:$0xf]
    %v859 = vld [vmem:[#allocation4 + $0x40] sm:$0x1]
    %v860 = vlaneseq
    %v861 = vshrl.u32 %v860, 7
    %v862 = vsub.s32 0, %v861
    %v863 = vrot.slane %v859, %v862
    %v880 = vunpack.c.l.b16 %v843
    %v881 = vunpack.c.l.b16 %v844
    %v882 = vunpack.c.l.b16 %v845
    %v883 = vunpack.c.l.b16 %v846
    %v884 = vunpack.c.l.b16 %v847
    %v885 = vunpack.c.l.b16 %v848
    %v886 = vunpack.c.l.b16 %v849
    %v887 = vunpack.c.l.b16 %v850
    %v888 = vunpack.c.l.b16 %v851
    %v889 = vunpack.c.l.b16 %v852
    %v890 = vunpack.c.l.b16 %v853
    %v891 = vunpack.c.l.b16 %v854
    %v892 = vunpack.c.l.b16 %v855
    %v893 = vunpack.c.l.b16 %v856
    %v894 = vunpack.c.l.b16 %v857
    %v895 = vunpack.c.l.b16 %v858
    %v896 = vpack.c.b16 %v881, %v880
    %v897 = vpack.c.b16 %v883, %v882
    %v898 = vpack.c.b16 %v885, %v884
    %v899 = vpack.c.b16 %v887, %v886
    %v900 = vpack.c.b16 %v889, %v888
    %v901 = vpack.c.b16 %v891, %v890
    %v902 = vpack.c.b16 %v893, %v892
    %v903 = vpack.c.b16 %v895, %v894
    %912 = vmatprep.subr.bf16.mxu0 0
    %913 = vmatpush1.bf16.msra.mxu0 %v896
    %914 = vmatprep.subr.bf16.mxu0 0
    %915 = vmatpush1.bf16.msra.mxu0 %v897
    %916 = vmatprep.subr.bf16.mxu0 0
    %917 = vmatpush1.bf16.msra.mxu0 %v898
    %918 = vmatprep.subr.bf16.mxu0 0
    %919 = vmatpush1.bf16.msra.mxu0 %v899
    %920 = vmatprep.subr.bf16.mxu0 0
    %921 = vmatpush1.bf16.msra.mxu0 %v900
    %922 = vmatprep.subr.bf16.mxu0 0
    %923 = vmatpush1.bf16.msra.mxu0 %v901
    %924 = vmatprep.subr.bf16.mxu0 0
    %925 = vmatpush1.bf16.msra.mxu0 %v902
    %926 = vmatprep.subr.bf16.mxu0 0
    %927 = vmatpush1.bf16.msra.mxu0 %v903
    %928 = vmatprep.subr.bf16.mxu0 0
    %929 = vmatpush1.bf16.msra.mxu0 0
    %930 = vmatprep.subr.bf16.mxu0 0
    %931 = vmatpush1.bf16.msra.mxu0 0
    %932 = vmatprep.subr.bf16.mxu0 0
    %933 = vmatpush1.bf16.msra.mxu0 0
    %934 = vmatprep.subr.bf16.mxu0 0
    %935 = vmatpush1.bf16.msra.mxu0 0
    %936 = vmatprep.subr.bf16.mxu0 0
    %937 = vmatpush1.bf16.msra.mxu0 0
    %938 = vmatprep.subr.bf16.mxu0 0
    %939 = vmatpush1.bf16.msra.mxu0 0
    %940 = vmatprep.subr.bf16.mxu0 0
    %941 = vmatpush1.bf16.msra.mxu0 0
    %942 = vmatprep.subr.bf16.mxu0 0
    %943 = vmatpush1.bf16.msra.mxu0 0
    %944 = vmatprep.mubr.bf16.mxu0 0
    %945 = vmatmul.mubr.bf16.gmra.mrb[0].mxu0 %v842
    %v946 = vpop.f32.mrb[0].mxu0
    %v947 = vadd.f32 %v863, %v946
    %v948 = vpop.f32.mrb[0].mxu0
    %v949 = vpop.f32.mrb[0].mxu0
    %v950 = vpop.f32.mrb[0].mxu0
    %951 = vdwg.mxu0
    %v952 = vpack.c.bf16 %v552, %v265
    %v953 = vld [vmem:[#allocation2 + $0x80] sm:$0xf]
    %v954 = vld [vmem:[#allocation2 + $0x84] sm:$0xf]
    %v955 = vld [vmem:[#allocation2 + $0x88] sm:$0xf]
    %v956 = vld [vmem:[#allocation2 + $0x8c] sm:$0xf]
    %v957 = vld [vmem:[#allocation2 + $0x90] sm:$0xf]
    %v958 = vld [vmem:[#allocation2 + $0x94] sm:$0xf]
    %v959 = vld [vmem:[#allocation2 + $0x98] sm:$0xf]
    %v960 = vld [vmem:[#allocation2 + $0x9c] sm:$0xf]
    %v961 = vld [vmem:[#allocation2 + $0xa0] sm:$0xf]
    %v962 = vld [vmem:[#allocation2 + $0xa4] sm:$0xf]
    %v963 = vld [vmem:[#allocation2 + $0xa8] sm:$0xf]
    %v964 = vld [vmem:[#allocation2 + $0xac] sm:$0xf]
    %v965 = vld [vmem:[#allocation2 + $0xb0] sm:$0xf]
    %v966 = vld [vmem:[#allocation2 + $0xb4] sm:$0xf]
    %v967 = vld [vmem:[#allocation2 + $0xb8] sm:$0xf]
    %v968 = vld [vmem:[#allocation2 + $0xbc] sm:$0xf]
    %v969 = vld [vmem:[#allocation4 + $0x10] sm:$0x1]
    %v970 = vlaneseq
    %v971 = vshrl.u32 %v970, 7
    %v972 = vsub.s32 0, %v971
    %v973 = vrot.slane %v969, %v972
    %v990 = vunpack.c.l.b16 %v953
    %v991 = vunpack.c.l.b16 %v954
    %v992 = vunpack.c.l.b16 %v955
    %v993 = vunpack.c.l.b16 %v956
    %v994 = vunpack.c.l.b16 %v957
    %v995 = vunpack.c.l.b16 %v958
    %v996 = vunpack.c.l.b16 %v959
    %v997 = vunpack.c.l.b16 %v960
    %v998 = vunpack.c.l.b16 %v961
    %v999 = vunpack.c.l.b16 %v962
    %v1000 = vunpack.c.l.b16 %v963
    %v1001 = vunpack.c.l.b16 %v964
    %v1002 = vunpack.c.l.b16 %v965
    %v1003 = vunpack.c.l.b16 %v966
    %v1004 = vunpack.c.l.b16 %v967
    %v1005 = vunpack.c.l.b16 %v968
    %v1006 = vpack.c.b16 %v991, %v990
    %v1007 = vpack.c.b16 %v993, %v992
    %v1008 = vpack.c.b16 %v995, %v994
    %v1009 = vpack.c.b16 %v997, %v996
    %v1010 = vpack.c.b16 %v999, %v998
    %v1011 = vpack.c.b16 %v1001, %v1000
    %v1012 = vpack.c.b16 %v1003, %v1002
    %v1013 = vpack.c.b16 %v1005, %v1004
    %1022 = vmatprep.subr.bf16.mxu0 0
    %1023 = vmatpush1.bf16.msra.mxu0 %v1006
    %1024 = vmatprep.subr.bf16.mxu0 0
    %1025 = vmatpush1.bf16.msra.mxu0 %v1007
    %1026 = vmatprep.subr.bf16.mxu0 0
    %1027 = vmatpush1.bf16.msra.mxu0 %v1008
    %1028 = vmatprep.subr.bf16.mxu0 0
    %1029 = vmatpush1.bf16.msra.mxu0 %v1009
    %1030 = vmatprep.subr.bf16.mxu0 0
    %1031 = vmatpush1.bf16.msra.mxu0 %v1010
    %1032 = vmatprep.subr.bf16.mxu0 0
    %1033 = vmatpush1.bf16.msra.mxu0 %v1011
    %1034 = vmatprep.subr.bf16.mxu0 0
    %1035 = vmatpush1.bf16.msra.mxu0 %v1012
    %1036 = vmatprep.subr.bf16.mxu0 0
    %1037 = vmatpush1.bf16.msra.mxu0 %v1013
    %1038 = vmatprep.subr.bf16.mxu0 0
    %1039 = vmatpush1.bf16.msra.mxu0 0
    %1040 = vmatprep.subr.bf16.mxu0 0
    %1041 = vmatpush1.bf16.msra.mxu0 0
    %1042 = vmatprep.subr.bf16.mxu0 0
    %1043 = vmatpush1.bf16.msra.mxu0 0
    %1044 = vmatprep.subr.bf16.mxu0 0
    %1045 = vmatpush1.bf16.msra.mxu0 0
    %1046 = vmatprep.subr.bf16.mxu0 0
    %1047 = vmatpush1.bf16.msra.mxu0 0
    %1048 = vmatprep.subr.bf16.mxu0 0
    %1049 = vmatpush1.bf16.msra.mxu0 0
    %1050 = vmatprep.subr.bf16.mxu0 0
    %1051 = vmatpush1.bf16.msra.mxu0 0
    %1052 = vmatprep.subr.bf16.mxu0 0
    %1053 = vmatpush1.bf16.msra.mxu0 0
    %1054 = vmatprep.mubr.bf16.mxu0 0
    %1055 = vmatmul.mubr.bf16.gmra.mrb[0].mxu0 %v952
    %v1056 = vpop.f32.mrb[0].mxu0
    %v1057 = vadd.f32 %v973, %v1056
    %v1058 = vpop.f32.mrb[0].mxu0
    %v1059 = vpop.f32.mrb[0].mxu0
    %v1060 = vadd.f32 %v973, %v1059
    %v1061 = vpop.f32.mrb[0].mxu0
    %1062 = vmatprep.mubr.bf16.mxu0 0
    %1063 = vmatmul.mubr.bf16.gmra.mrb[0].mxu0 %v272
    %v1064 = vpop.f32.mrb[0].mxu0
    %v1065 = vadd.f32 %v973, %v1064
    %v1066 = vpop.f32.mrb[0].mxu0
    %v1067 = vpop.f32.mrb[0].mxu0
    %v1068 = vpop.f32.mrb[0].mxu0
    %1069 = vdwg.mxu0
    %v1070 = vmax.f32 %v1057, 0.0
    %v1071 = vmax.f32 %v1060, 0.0
    %v1072 = vmax.f32 %v1065, 0.0
    %v1073 = vpack.c.bf16 %v1071, %v1070
    %v1074 = vpack.c.bf16 %v1072, %v1072
    %v1075 = vld [vmem:[#allocation2 + $0xc0] sm:$0xf]
    %v1076 = vld [vmem:[#allocation2 + $0xc4] sm:$0xf]
    %v1077 = vld [vmem:[#allocation2 + $0xc8] sm:$0xf]
    %v1078 = vld [vmem:[#allocation2 + $0xcc] sm:$0xf]
    %v1079 = vld [vmem:[#allocation2 + $0xd0] sm:$0xf]
    %v1080 = vld [vmem:[#allocation2 + $0xd4] sm:$0xf]
    %v1081 = vld [vmem:[#allocation2 + $0xd8] sm:$0xf]
    %v1082 = vld [vmem:[#allocation2 + $0xdc] sm:$0xf]
    %v1083 = vld [vmem:[#allocation2 + $0xe0] sm:$0xf]
    %v1084 = vld [vmem:[#allocation2 + $0xe4] sm:$0xf]
    %v1085 = vld [vmem:[#allocation2 + $0xe8] sm:$0xf]
    %v1086 = vld [vmem:[#allocation2 + $0xec] sm:$0xf]
    %v1087 = vld [vmem:[#allocation2 + $0xf0] sm:$0xf]
    %v1088 = vld [vmem:[#allocation2 + $0xf4] sm:$0xf]
    %v1089 = vld [vmem:[#allocation2 + $0xf8] sm:$0xf]
    %v1090 = vld [vmem:[#allocation2 + $0xfc] sm:$0xf]
    %v1091 = vld [vmem:[#allocation4 + $0x18] sm:$0x1]
    %v1092 = vlaneseq
    %v1093 = vshrl.u32 %v1092, 7
    %v1094 = vsub.s32 0, %v1093
    %v1095 = vrot.slane %v1091, %v1094
    %v1112 = vunpack.c.l.b16 %v1075
    %v1113 = vunpack.c.l.b16 %v1076
    %v1114 = vunpack.c.l.b16 %v1077
    %v1115 = vunpack.c.l.b16 %v1078
    %v1116 = vunpack.c.l.b16 %v1079
    %v1117 = vunpack.c.l.b16 %v1080
    %v1118 = vunpack.c.l.b16 %v1081
    %v1119 = vunpack.c.l.b16 %v1082
    %v1120 = vunpack.c.l.b16 %v1083
    %v1121 = vunpack.c.l.b16 %v1084
    %v1122 = vunpack.c.l.b16 %v1085
    %v1123 = vunpack.c.l.b16 %v1086
    %v1124 = vunpack.c.l.b16 %v1087
    %v1125 = vunpack.c.l.b16 %v1088
    %v1126 = vunpack.c.l.b16 %v1089
    %v1127 = vunpack.c.l.b16 %v1090
    %v1128 = vpack.c.b16 %v1113, %v1112
    %v1129 = vpack.c.b16 %v1115, %v1114
    %v1130 = vpack.c.b16 %v1117, %v1116
    %v1131 = vpack.c.b16 %v1119, %v1118
    %v1132 = vpack.c.b16 %v1121, %v1120
    %v1133 = vpack.c.b16 %v1123, %v1122
    %v1134 = vpack.c.b16 %v1125, %v1124
    %v1135 = vpack.c.b16 %v1127, %v1126
    %1144 = vmatprep.subr.bf16.mxu0 0
    %1145 = vmatpush1.bf16.msra.mxu0 %v1128
    %1146 = vmatprep.subr.bf16.mxu0 0
    %1147 = vmatpush1.bf16.msra.mxu0 %v1129
    %1148 = vmatprep.subr.bf16.mxu0 0
    %1149 = vmatpush1.bf16.msra.mxu0 %v1130
    %1150 = vmatprep.subr.bf16.mxu0 0
    %1151 = vmatpush1.bf16.msra.mxu0 %v1131
    %1152 = vmatprep.subr.bf16.mxu0 0
    %1153 = vmatpush1.bf16.msra.mxu0 %v1132
    %1154 = vmatprep.subr.bf16.mxu0 0
    %1155 = vmatpush1.bf16.msra.mxu0 %v1133
    %1156 = vmatprep.subr.bf16.mxu0 0
    %1157 = vmatpush1.bf16.msra.mxu0 %v1134
    %1158 = vmatprep.subr.bf16.mxu0 0
    %1159 = vmatpush1.bf16.msra.mxu0 %v1135
    %1160 = vmatprep.subr.bf16.mxu0 0
    %1161 = vmatpush1.bf16.msra.mxu0 0
    %1162 = vmatprep.subr.bf16.mxu0 0
    %1163 = vmatpush1.bf16.msra.mxu0 0
    %1164 = vmatprep.subr.bf16.mxu0 0
    %1165 = vmatpush1.bf16.msra.mxu0 0
    %1166 = vmatprep.subr.bf16.mxu0 0
    %1167 = vmatpush1.bf16.msra.mxu0 0
    %1168 = vmatprep.subr.bf16.mxu0 0
    %1169 = vmatpush1.bf16.msra.mxu0 0
    %1170 = vmatprep.subr.bf16.mxu0 0
    %1171 = vmatpush1.bf16.msra.mxu0 0
    %1172 = vmatprep.subr.bf16.mxu0 0
    %1173 = vmatpush1.bf16.msra.mxu0 0
    %1174 = vmatprep.subr.bf16.mxu0 0
    %1175 = vmatpush1.bf16.msra.mxu0 0
    %1176 = vmatprep.mubr.bf16.mxu0 0
    %1177 = vmatmul.mubr.bf16.gmra.mrb[0].mxu0 %v1073
    %v1178 = vpop.f32.mrb[0].mxu0
    %v1179 = vadd.f32 %v1095, %v1178
    %v1180 = vpop.f32.mrb[0].mxu0
    %v1181 = vpop.f32.mrb[0].mxu0
    %v1182 = vadd.f32 %v1095, %v1181
    %v1183 = vpop.f32.mrb[0].mxu0
    %1184 = vmatprep.mubr.bf16.mxu0 0
    %1185 = vmatmul.mubr.bf16.gmra.mrb[0].mxu0 %v1074
    %v1186 = vpop.f32.mrb[0].mxu0
    %v1187 = vadd.f32 %v1095, %v1186
    %v1188 = vpop.f32.mrb[0].mxu0
    %v1189 = vpop.f32.mrb[0].mxu0
    %v1190 = vpop.f32.mrb[0].mxu0
    %1191 = vdwg.mxu0
    %1192 = vst [vmem:[%s3] sm:$0xff] %v265
    %1193 = vst [vmem:[%s3 + $0x8] sm:$0xff] %v268
    %1194 = vst [vmem:[%s3 + $0x10] sm:$0xff] %v552
    %1195 = vst [vmem:[%s3 + $0x18] sm:$0xff] %v947
    %1196 = vst [vmem:[%s3 + $0x20] sm:$0xff] %v1179
    %1197 = vst [vmem:[%s3 + $0x28] sm:$0xff] %v1187
    %1198 = vst [vmem:[%s3 + $0x30] sm:$0xff] %v1182
    // Predicated region
    $region22: #{upn_forward.1} parent=1 // pred_check
      _
    $region23: #{upn_forward.1} parent=1 // pred_check_branch
      %1200 = sbr.rel (0) target = $region25
    $region24: #{upn_forward.1} parent=1 // pred_region
      _
    $region25: #{upn_forward.1} parent=1 // pred_fallthru
      _
    // Predicated region
    $region26: #{upn_forward.1} parent=1 // pred_check
      _
    $region27: #{upn_forward.1} parent=1 // pred_check_branch
      %1202 = sbr.rel (0) target = $region29
    $region28: #{upn_forward.1} parent=1 // pred_region
      _
    $region29: #{upn_forward.1} parent=1 // pred_fallthru
      _
    %1203 = vsyncpa [#allocation3], 1
    %1204 = vsyncpa [#allocation5], 1

</llo_original>
